<compile_context>
chip_gen: v6e
topology: v6e:2x2x1
jax: 0.10.0
libtpu: 0.0.40
codegen_flags: <defaults>
</compile_context>

<pallas_src>
import jax
import jax.numpy as jnp
import numpy as np
from jax.experimental import pallas as pl
from jax.experimental.pallas import tpu as pltpu


def _make_copy_kernel(bounds):
    """Build a kernel copying the flat (1, total) buffer HBM->HBM in len(bounds) DMAs."""

    def kernel(x_hbm, o_hbm, sems):
        copies = []
        # Static Python loop: all chunk boundaries are compile-time constants.
        for i, (start, size) in enumerate(bounds):
            cp = pltpu.make_async_copy(
                x_hbm.at[:, pl.ds(start, size)],
                o_hbm.at[:, pl.ds(start, size)],
                sems.at[i])
            cp.start()
            copies.append(cp)
        # All chunks are in flight (can use multiple DMA engines); drain them.
        for cp in copies:
            cp.wait()

    return kernel


def unflatten(x, dim, unflatten_shape):
    """Unflatten forward matching the reference module.

    Replaces dimension `dim` of `x` with `unflatten_shape`.  The data movement
    (identity copy) is done by chunked HBM->HBM DMAs inside a Pallas kernel;
    the reshape itself is metadata handled in the wrapper.
    """
    shape = list(x.shape)
    ndim = len(shape)
    d = dim % ndim
    assert int(np.prod(unflatten_shape)) == shape[d], (
        "prod(unflatten_shape) must equal the size of the unflattened dim")
    out_shape = tuple(shape[:d]) + tuple(unflatten_shape) + tuple(shape[d + 1:])

    total = int(np.prod(shape)) if shape else 1
    if total == 0:
        return jnp.reshape(x, out_shape)

    itemsize = jnp.dtype(x.dtype).itemsize

    # Chunk the flat buffer into contiguous DMA pieces.  Target ~8 MiB per DMA
    # so large inputs keep several DMAs in flight; small inputs use one DMA.
    target_chunk_bytes = 8 << 20
    max_chunks = 16
    n_chunks = max(1, min(max_chunks, pl.cdiv(total * itemsize, target_chunk_bytes)))
    chunk_elems = pl.cdiv(total, n_chunks)
    # Round the chunk length up to a multiple of 128 elements so all chunk
    # starts (except possibly the last chunk's end) are nicely aligned.
    chunk_elems = max(1, ((chunk_elems + 127) // 128) * 128)
    bounds = []
    s = 0
    while s < total:
        sz = min(chunk_elems, total - s)
        bounds.append((s, sz))
        s += sz

    # Lane-trivial flat view: a (1, total) contiguous slab.  Since both sides
    # of the DMA live in HBM there is no VMEM tiling / lane-width constraint,
    # and every chunk is a purely contiguous copy.
    x2 = jnp.reshape(x, (1, total))

    out2 = pl.pallas_call(
        _make_copy_kernel(tuple(bounds)),
        out_shape=jax.ShapeDtypeStruct((1, total), x.dtype),
        in_specs=[pl.BlockSpec(memory_space=pl.ANY)],
        out_specs=pl.BlockSpec(memory_space=pl.ANY),
        scratch_shapes=[pltpu.SemaphoreType.DMA((len(bounds),))],
        cost_estimate=pl.CostEstimate(
            flops=0, transcendentals=0, bytes_accessed=2 * total * itemsize),
    )(x2)

    return jnp.reshape(out2, out_shape)


def _unflatten_numpy_ref(inp, dim, unflatten_shape):
    """Direct port of the reference module's forward."""
    shape = list(inp.shape)
    shape = shape[:dim] + list(unflatten_shape) + shape[dim + 1:]
    return inp.reshape(shape)


if __name__ == "__main__":
    key = jax.random.PRNGKey(0)
    k1, k2, k3 = jax.random.split(key, 3)

    # Case 1: the module's doctest — (2, 12), Unflatten(1, (3, 4)) -> (2, 3, 4)
    x1 = jax.random.normal(k1, (2, 12), dtype=jnp.float32)
    y1 = jax.block_until_ready(unflatten(x1, 1, (3, 4)))
    assert y1.shape == (2, 3, 4), y1.shape
    np.testing.assert_array_equal(
        np.asarray(y1), _unflatten_numpy_ref(np.asarray(x1), 1, (3, 4)))

    # Case 2: non-trailing-dim case: (2, 4, 256), Unflatten(2, (16, 16))
    x2 = jax.random.normal(k2, (2, 4, 256), dtype=jnp.float32)
    y2 = jax.block_until_ready(unflatten(x2, 2, (16, 16)))
    assert y2.shape == (2, 4, 16, 16), y2.shape
    np.testing.assert_array_equal(
        np.asarray(y2), _unflatten_numpy_ref(np.asarray(x2), 2, (16, 16)))

    # Case 3: bf16 dtype (bitwise copy must be exact): (2, 8, 32), dim 1 -> (2, 4)
    x3 = jax.random.normal(k3, (2, 8, 32)).astype(jnp.bfloat16)
    y3 = jax.block_until_ready(unflatten(x3, 1, (2, 4)))
    assert y3.shape == (2, 2, 4, 32), y3.shape
    np.testing.assert_array_equal(
        np.asarray(y3), _unflatten_numpy_ref(np.asarray(x3), 1, (2, 4)))

    print("KERNEL_OK")
</pallas_src>

<mosaic_0001>
module attributes {stable_mosaic.version = 11 : i64} {
  func.func @kernel(%arg0: memref<1x24xf32, #tpu.memory_space<any>>, %arg1: memref<1x24xf32, #tpu.memory_space<any>>, %arg2: memref<1x!tpu.dma_semaphore, #tpu.memory_space<semaphore_mem>>) attributes {dimension_semantics = [], scalar_prefetch = 0 : i64, scratch_operands = 1 : i64, tpu.core_type = #tpu.core_type<tc>} {
    %c0_i32 = arith.constant 0 : i32
    %c0_i32_0 = arith.constant 0 : i32
    %c0_i32_1 = arith.constant 0 : i32
    %0 = tpu.memref_slice %arg0[%c0_i32_0, %c0_i32_1] : memref<1x24xf32, #tpu.memory_space<any>> -> memref<1x24xf32, #tpu.memory_space<any>>
    %c0_i32_2 = arith.constant 0 : i32
    %c0_i32_3 = arith.constant 0 : i32
    %1 = tpu.memref_slice %arg1[%c0_i32_2, %c0_i32_3] : memref<1x24xf32, #tpu.memory_space<any>> -> memref<1x24xf32, #tpu.memory_space<any>>
    %2 = tpu.memref_slice %arg2[%c0_i32] : memref<1x!tpu.dma_semaphore, #tpu.memory_space<semaphore_mem>> -> memref<1x!tpu.dma_semaphore, #tpu.memory_space<semaphore_mem>>
    %3 = tpu.memref_squeeze %2 : memref<1x!tpu.dma_semaphore, #tpu.memory_space<semaphore_mem>> -> memref<!tpu.dma_semaphore, #tpu.memory_space<semaphore_mem>>
    tpu.enqueue_dma source(%0 : memref<1x24xf32, #tpu.memory_space<any>>) target(%1 : memref<1x24xf32, #tpu.memory_space<any>>) target_semaphore(%3 : memref<!tpu.dma_semaphore, #tpu.memory_space<semaphore_mem>>)
    %c0_i32_4 = arith.constant 0 : i32
    %c0_i32_5 = arith.constant 0 : i32
    %c0_i32_6 = arith.constant 0 : i32
    %4 = tpu.memref_slice %arg0[%c0_i32_5, %c0_i32_6] : memref<1x24xf32, #tpu.memory_space<any>> -> memref<1x24xf32, #tpu.memory_space<any>>
    %c0_i32_7 = arith.constant 0 : i32
    %c0_i32_8 = arith.constant 0 : i32
    %5 = tpu.memref_slice %arg1[%c0_i32_7, %c0_i32_8] : memref<1x24xf32, #tpu.memory_space<any>> -> memref<1x24xf32, #tpu.memory_space<any>>
    %6 = tpu.memref_slice %arg2[%c0_i32_4] : memref<1x!tpu.dma_semaphore, #tpu.memory_space<semaphore_mem>> -> memref<1x!tpu.dma_semaphore, #tpu.memory_space<semaphore_mem>>
    %7 = tpu.memref_squeeze %6 : memref<1x!tpu.dma_semaphore, #tpu.memory_space<semaphore_mem>> -> memref<!tpu.dma_semaphore, #tpu.memory_space<semaphore_mem>>
    tpu.wait_dma2 semaphore(%7 : memref<!tpu.dma_semaphore, #tpu.memory_space<semaphore_mem>>) src(%4 : memref<1x24xf32, #tpu.memory_space<any>>) dst(%5 : memref<1x24xf32, #tpu.memory_space<any>>)
    return
  }
}

</mosaic_0001>

<llo_original>
// kernel: tpu_custom_call.1
$region0: #{tpu_custom_call.1}
  #allocation0 [shape = 'u32[]', space=smem, size = 0x4, offset = 0x4, fixed_abs, tag = 'smem constant byte address 0x4 - core index']
  #allocation1 [shape = 'u32[144,128]{1,0:T(1,128)}', space=vmem, size = 0x12000, scoped, tag = 'internal scratch']
  #allocation2 [shape = 's32[1]{0}', space=sflag, size = 0x4, scoped, tag = 'scratch operand']
  #allocation3 [shape = 's32[]', space=sflag, size = 0x4, offset = 0, fixed_abs, tag = 'sflag constant byte address 0x0 - dummy sync flag']
  #allocation4 [shape = 'u32[0]{0}', space=smem, size = 0, offset = 0, fixed_abs, tag = 'smem constant byte address 0x0 - null']
  %s0 = inlined_call_operand.hbm [shape: f32[1,24], index: 0, kind: input, shape index: {}]
  %s1 = inlined_call_operand.hbm [shape: f32[1,24], index: 1, kind: output, shape index: {}]
  %s2 = sld [smem:[#allocation0]]
  $region2: #{tpu_custom_call.1} parent=0
    _
  %s4 = ssub.s32 1, %s2
  %s5 = scalar_select 0, %s4, %s2
  %s7 = sshll.u32 1, 14
  %s8 = sxor.u32 4294967295, %s7
  %12 = dma.general %s0, 16, %s1, [#allocation2], 131072, [#allocation4], 0, 0
  %s13 = smul.u32 1, 1
  %s14 = sshll.u32 %s13, 4
  %15 = dma.done [#allocation2], %s14
  %16 = vsyncmov [#allocation2]
  %s17 = vpop.sfrf %16
  %p18 = scmp.eq.s32.totalorder %s17, 0
  %p19 = pneg %p18
  %21 = shalt.err (%p19)

</llo_original>
